<compile_context>
chip_gen: v7x
topology: tpu7x:2x2x1
jax: 0.10.0
libtpu: 0.0.40
codegen_flags: <defaults>
</compile_context>

<pallas_src>
import jax
import jax.numpy as jnp
from jax.experimental import pallas as pl
from jax.experimental.pallas import tpu as pltpu

# ---------------- configuration (small synthetic sizes) ----------------
B = 2          # batch
N = 8          # query "instances" per bag
M = 8          # key "instances" (== A_dim for WA)
D_IN = 32      # inputd
HD = 16        # hd
A_DIM = M      # WA: Linear(A_dim, 1) acts over the key axis of A
TAU = 1.0
EPS = 1e-12    # F.normalize eps
OUT_W = 128    # lane-dense packed output width


def _casii_kernel(q_ref, k_ref, wqv_ref, bqv_ref, wk_ref, bk_ref,
                  wa_ref, ba_ref, wc_ref, bc_ref, out_ref):
    f32 = jnp.float32
    q = q_ref[...]      # (B*N, D_IN)
    kx = k_ref[...]     # (B*M, D_IN)

    # Fused WQ|WV projection: a single MXU pass over the whole flattened batch.
    # Weight arrives pre-transposed/concatenated as (D_IN, 2*HD).
    qv = jnp.dot(q, wqv_ref[...], preferred_element_type=f32) + bqv_ref[...]   # (B*N, 2*HD)
    Q = jnp.tanh(qv[:, :HD])                       # (B*N, HD)
    V = jnp.maximum(qv[:, HD:], 0.0)               # (B*N, HD)

    # WK projection (pre-transposed weight, (D_IN, HD)).
    K = jnp.tanh(jnp.dot(kx, wk_ref[...], preferred_element_type=f32) + bk_ref[...])  # (B*M, HD)

    # F.normalize(p=2, dim=-1): x / max(||x||, eps) == x * rsqrt(max(||x||^2, eps^2))  (EUP rsqrt)
    qn = Q * jax.lax.rsqrt(jnp.maximum(jnp.sum(Q * Q, axis=-1, keepdims=True), EPS * EPS))
    kn = K * jax.lax.rsqrt(jnp.maximum(jnp.sum(K * K, axis=-1, keepdims=True), EPS * EPS))

    wa_col = wa_ref[...]   # (M, 1)
    ba = ba_ref[...]       # (1, 1)
    wc_row = wc_ref[...]   # (1, HD)
    bc = bc_ref[...]       # (1, 1)
    pad = jnp.zeros((1, OUT_W - 1 - N), f32)

    rows = []
    for b in range(B):     # B is tiny and static -> fully unrolled, no grid-step cost
        qn_b = qn[b * N:(b + 1) * N, :]   # (N, HD)   static, sublane-aligned slices
        kn_b = kn[b * M:(b + 1) * M, :]   # (M, HD)
        v_b = V[b * N:(b + 1) * N, :]     # (N, HD)

        # WA folded through the bilinear form:
        #   logit[n] = sum_m (qn_b[n] . kn_b[m]) * wa[m] + ba
        #            = qn_b[n] . (sum_m wa[m] * kn_b[m]) + ba
        # -> no (N, M) matrix, no 1-row MXU matmul; pure VPU multiply + reduce.
        kw = jnp.sum(wa_col * kn_b, axis=0, keepdims=True)          # (1, HD)
        logit = jnp.sum(qn_b * kw, axis=-1, keepdims=True) + ba     # (N, 1)

        # softmax over the N instances with temperature tau
        l = logit * (1.0 / TAU)
        mx = jnp.max(l, axis=0, keepdims=True)
        e = jnp.exp(l - mx)
        s = jnp.sum(e, axis=0, keepdims=True)
        # approx=True would use the EUP table reciprocal (free slot) at ~1e-4
        # relative error; kept exact to hold the 1e-5 reference check.
        attn_col = e * pl.reciprocal(s, approx=False)               # (N, 1)

        # attention pooling + classifier as VPU contractions (no 1-row MXU passes)
        z = jnp.sum(attn_col * v_b, axis=0, keepdims=True)          # (1, HD)
        y = jnp.sum(z * wc_row, axis=-1, keepdims=True) + bc        # (1, 1)

        attn_row = jnp.transpose(attn_col)                          # (1, N) tiny relayout
        rows.append(jnp.concatenate([y, attn_row, pad], axis=-1))   # (1, OUT_W)

    # One unmasked, lane-dense store: lane 0 = Y_prob, lanes 1..N = attention.
    out_ref[...] = jnp.concatenate(rows, axis=0)                    # (B, OUT_W)


def casii_head_forward(query, key, params):
    """query: (B, N, D_IN), key: (B, M, D_IN).  Returns (Y_prob (B,1), A (B,1,N))."""
    wq, bq, wk, bk, wv, bv, wa, ba, wc, bc = params

    # Wrapper-side layout plumbing (free for the kernel): flatten batch, fuse and
    # pre-transpose weights so the kernel never transposes a matmul operand.
    q_flat = query.reshape(B * N, D_IN)
    k_flat = key.reshape(B * M, D_IN)
    wqv_t = jnp.concatenate([wq.T, wv.T], axis=1)          # (D_IN, 2*HD)  [WQ | WV]
    bqv = jnp.concatenate([bq, bv]).reshape(1, 2 * HD)
    wk_t = wk.T                                            # (D_IN, HD)
    bk2 = bk.reshape(1, HD)
    wa_col = wa.reshape(A_DIM, 1)                          # (M, 1)
    ba2 = ba.reshape(1, 1)
    wc2 = wc.reshape(1, HD)
    bc2 = bc.reshape(1, 1)

    vmem = pl.BlockSpec(memory_space=pltpu.MemorySpace.VMEM)
    packed = pl.pallas_call(
        _casii_kernel,
        out_shape=jax.ShapeDtypeStruct((B, OUT_W), jnp.float32),
        in_specs=[vmem] * 10,
        out_specs=vmem,
    )(q_flat, k_flat, wqv_t, bqv, wk_t, bk2, wa_col, ba2, wc2, bc2)

    y = packed[:, 0:1]                        # (B, 1)       Y_prob (no sigmoid in the module)
    a = packed[:, 1:1 + N].reshape(B, 1, N)   # (B, 1, N) == A.permute(0, 2, 1)
    return y, a


def _reference_forward(query, key, params):
    wq, bq, wk, bk, wv, bv, wa, ba, wc, bc = params
    value = jnp.maximum(query @ wv.T + bv, 0.0)
    Q = jnp.tanh(query @ wq.T + bq)
    K = jnp.tanh(key @ wk.T + bk)
    qn = Q / jnp.maximum(jnp.linalg.norm(Q, axis=2, keepdims=True), EPS)
    kn = K / jnp.maximum(jnp.linalg.norm(K, axis=2, keepdims=True), EPS)
    A = qn @ jnp.swapaxes(kn, 2, 1)            # (B, N, M)
    A = (A @ wa.T + ba)[..., 0]                # (B, N)
    A = jax.nn.softmax(A / TAU, axis=1)[..., None]   # (B, N, 1)
    Ap = jnp.transpose(A, (0, 2, 1))           # (B, 1, N)
    z = (Ap @ value).reshape(-1, HD)
    y = z @ wc.T + bc
    return y, Ap


def _init_params(key):
    ks = jax.random.split(key, 10)
    def lin(kw, kb, out_f, in_f):
        bound = 1.0 / jnp.sqrt(in_f)
        w = jax.random.uniform(kw, (out_f, in_f), jnp.float32, -bound, bound)
        b = jax.random.uniform(kb, (out_f,), jnp.float32, -bound, bound)
        return w, b
    wq, bq = lin(ks[0], ks[1], HD, D_IN)
    wk, bk = lin(ks[2], ks[3], HD, D_IN)
    wv, bv = lin(ks[4], ks[5], HD, D_IN)
    wa, ba = lin(ks[6], ks[7], 1, A_DIM)
    wc, bc = lin(ks[8], ks[9], 1, HD)
    return (wq, bq, wk, bk, wv, bv, wa, ba, wc, bc)


if __name__ == "__main__":
    root = jax.random.PRNGKey(0)
    kq, kk, kp = jax.random.split(root, 3)
    query = jax.random.normal(kq, (B, N, D_IN), jnp.float32)
    key = jax.random.normal(kk, (B, M, D_IN), jnp.float32)
    params = _init_params(kp)

    fwd = jax.jit(casii_head_forward)
    y_prob, A = fwd(query, key, params)
    jax.block_until_ready((y_prob, A))

    y_ref, A_ref = _reference_forward(query, key, params)
    assert y_prob.shape == (B, 1) and A.shape == (B, 1, N)
    assert jnp.allclose(y_prob, y_ref, atol=1e-5, rtol=1e-4)
    assert jnp.allclose(A, A_ref, atol=1e-5, rtol=1e-4)

    print("KERNEL_OK")
</pallas_src>

<mosaic_0001>
module attributes {stable_mosaic.version = 11 : i64} {
  func.func @_casii_kernel(%arg0: memref<16x32xf32, #tpu.memory_space<vmem>>, %arg1: memref<16x32xf32, #tpu.memory_space<vmem>>, %arg2: memref<32x32xf32, #tpu.memory_space<vmem>>, %arg3: memref<1x32xf32, #tpu.memory_space<vmem>>, %arg4: memref<32x16xf32, #tpu.memory_space<vmem>>, %arg5: memref<1x16xf32, #tpu.memory_space<vmem>>, %arg6: memref<8x1xf32, #tpu.memory_space<vmem>>, %arg7: memref<1x1xf32, #tpu.memory_space<vmem>>, %arg8: memref<1x16xf32, #tpu.memory_space<vmem>>, %arg9: memref<1x1xf32, #tpu.memory_space<vmem>>, %arg10: memref<2x128xf32, #tpu.memory_space<vmem>>) attributes {dimension_semantics = [], scalar_prefetch = 0 : i64, scratch_operands = 0 : i64, tpu.core_type = #tpu.core_type<tc>} {
    %c0 = arith.constant 0 : index
    %c0_0 = arith.constant 0 : index
    %0 = vector.load %arg0[%c0, %c0_0] : memref<16x32xf32, #tpu.memory_space<vmem>>, vector<16x32xf32>
    %c0_1 = arith.constant 0 : index
    %c0_2 = arith.constant 0 : index
    %1 = vector.load %arg1[%c0_1, %c0_2] : memref<16x32xf32, #tpu.memory_space<vmem>>, vector<16x32xf32>
    %c0_3 = arith.constant 0 : index
    %c0_4 = arith.constant 0 : index
    %2 = vector.load %arg2[%c0_3, %c0_4] : memref<32x32xf32, #tpu.memory_space<vmem>>, vector<32x32xf32>
    %cst = arith.constant dense<0.000000e+00> : vector<16x32xf32>
    %3 = tpu.matmul %0, %2, %cst {dimension_numbers = #tpu.dot_dimension_numbers<[1], [0], [0], [1], [0, 0, 1, 1], [], []>} : vector<16x32xf32>, vector<32x32xf32>, vector<16x32xf32> -> vector<16x32xf32>
    %c0_5 = arith.constant 0 : index
    %c0_6 = arith.constant 0 : index
    %4 = vector.load %arg3[%c0_5, %c0_6] : memref<1x32xf32, #tpu.memory_space<vmem>>, vector<1x32xf32>
    %5 = vector.broadcast %4 : vector<1x32xf32> to vector<16x32xf32>
    %6 = arith.addf %3, %5 : vector<16x32xf32>
    %7 = vector.extract_strided_slice %6 {offsets = [0, 0], sizes = [16, 16], strides = [1, 1]} : vector<16x32xf32> to vector<16x16xf32>
    %8 = math.tanh %7 : vector<16x16xf32>
    %9 = vector.extract_strided_slice %6 {offsets = [0, 16], sizes = [16, 16], strides = [1, 1]} : vector<16x32xf32> to vector<16x16xf32>
    %cst_7 = arith.constant 0.000000e+00 : f32
    %10 = vector.broadcast %cst_7 : f32 to vector<16x16xf32>
    %11 = arith.maximumf %9, %10 : vector<16x16xf32>
    %c0_8 = arith.constant 0 : index
    %c0_9 = arith.constant 0 : index
    %12 = vector.load %arg4[%c0_8, %c0_9] : memref<32x16xf32, #tpu.memory_space<vmem>>, vector<32x16xf32>
    %cst_10 = arith.constant dense<0.000000e+00> : vector<16x16xf32>
    %13 = tpu.matmul %1, %12, %cst_10 {dimension_numbers = #tpu.dot_dimension_numbers<[1], [0], [0], [1], [0, 0, 1, 1], [], []>} : vector<16x32xf32>, vector<32x16xf32>, vector<16x16xf32> -> vector<16x16xf32>
    %c0_11 = arith.constant 0 : index
    %c0_12 = arith.constant 0 : index
    %14 = vector.load %arg5[%c0_11, %c0_12] : memref<1x16xf32, #tpu.memory_space<vmem>>, vector<1x16xf32>
    %15 = vector.broadcast %14 : vector<1x16xf32> to vector<16x16xf32>
    %16 = arith.addf %13, %15 : vector<16x16xf32>
    %17 = math.tanh %16 : vector<16x16xf32>
    %18 = arith.mulf %8, %8 : vector<16x16xf32>
    %cst_13 = arith.constant dense<0.000000e+00> : vector<16xf32>
    %19 = vector.multi_reduction <add>, %18, %cst_13 [1] : vector<16x16xf32> to vector<16xf32>
    %20 = vector.shape_cast %19 : vector<16xf32> to vector<16x1xf32>
    %cst_14 = arith.constant 1.000000e-24 : f32
    %21 = vector.broadcast %cst_14 : f32 to vector<16x1xf32>
    %22 = arith.maximumf %20, %21 : vector<16x1xf32>
    %23 = math.rsqrt %22 : vector<16x1xf32>
    %24 = vector.broadcast %23 : vector<16x1xf32> to vector<16x16xf32>
    %25 = arith.mulf %8, %24 : vector<16x16xf32>
    %26 = arith.mulf %17, %17 : vector<16x16xf32>
    %cst_15 = arith.constant dense<0.000000e+00> : vector<16xf32>
    %27 = vector.multi_reduction <add>, %26, %cst_15 [1] : vector<16x16xf32> to vector<16xf32>
    %28 = vector.shape_cast %27 : vector<16xf32> to vector<16x1xf32>
    %cst_16 = arith.constant 1.000000e-24 : f32
    %29 = vector.broadcast %cst_16 : f32 to vector<16x1xf32>
    %30 = arith.maximumf %28, %29 : vector<16x1xf32>
    %31 = math.rsqrt %30 : vector<16x1xf32>
    %32 = vector.broadcast %31 : vector<16x1xf32> to vector<16x16xf32>
    %33 = arith.mulf %17, %32 : vector<16x16xf32>
    %c0_17 = arith.constant 0 : index
    %c0_18 = arith.constant 0 : index
    %34 = vector.load %arg6[%c0_17, %c0_18] : memref<8x1xf32, #tpu.memory_space<vmem>>, vector<8x1xf32>
    %c0_19 = arith.constant 0 : index
    %c0_20 = arith.constant 0 : index
    %35 = vector.load %arg7[%c0_19, %c0_20] : memref<1x1xf32, #tpu.memory_space<vmem>>, vector<1x1xf32>
    %c0_21 = arith.constant 0 : index
    %c0_22 = arith.constant 0 : index
    %36 = vector.load %arg8[%c0_21, %c0_22] : memref<1x16xf32, #tpu.memory_space<vmem>>, vector<1x16xf32>
    %c0_23 = arith.constant 0 : index
    %c0_24 = arith.constant 0 : index
    %37 = vector.load %arg9[%c0_23, %c0_24] : memref<1x1xf32, #tpu.memory_space<vmem>>, vector<1x1xf32>
    %cst_25 = arith.constant 0.000000e+00 : f32
    %38 = vector.broadcast %cst_25 : f32 to vector<1x119xf32>
    %39 = vector.extract_strided_slice %25 {offsets = [0, 0], sizes = [8, 16], strides = [1, 1]} : vector<16x16xf32> to vector<8x16xf32>
    %40 = vector.extract_strided_slice %33 {offsets = [0, 0], sizes = [8, 16], strides = [1, 1]} : vector<16x16xf32> to vector<8x16xf32>
    %41 = vector.extract_strided_slice %11 {offsets = [0, 0], sizes = [8, 16], strides = [1, 1]} : vector<16x16xf32> to vector<8x16xf32>
    %42 = vector.broadcast %34 : vector<8x1xf32> to vector<8x16xf32>
    %43 = arith.mulf %42, %40 : vector<8x16xf32>
    %cst_26 = arith.constant dense<0.000000e+00> : vector<16xf32>
    %44 = vector.multi_reduction <add>, %43, %cst_26 [0] : vector<8x16xf32> to vector<16xf32>
    %45 = vector.shape_cast %44 : vector<16xf32> to vector<1x16xf32>
    %46 = vector.broadcast %45 : vector<1x16xf32> to vector<8x16xf32>
    %47 = arith.mulf %39, %46 : vector<8x16xf32>
    %cst_27 = arith.constant dense<0.000000e+00> : vector<8xf32>
    %48 = vector.multi_reduction <add>, %47, %cst_27 [1] : vector<8x16xf32> to vector<8xf32>
    %49 = vector.shape_cast %48 : vector<8xf32> to vector<8x1xf32>
    %50 = vector.broadcast %35 : vector<1x1xf32> to vector<8x1xf32>
    %51 = arith.addf %49, %50 : vector<8x1xf32>
    %cst_28 = arith.constant 1.000000e+00 : f32
    %52 = vector.broadcast %cst_28 : f32 to vector<8x1xf32>
    %53 = arith.mulf %51, %52 : vector<8x1xf32>
    %cst_29 = arith.constant dense<0xFF800000> : vector<1xf32>
    %54 = vector.multi_reduction <maximumf>, %53, %cst_29 [0] : vector<8x1xf32> to vector<1xf32>
    %55 = vector.shape_cast %54 : vector<1xf32> to vector<1x1xf32>
    %56 = vector.broadcast %55 : vector<1x1xf32> to vector<8x1xf32>
    %57 = arith.subf %53, %56 : vector<8x1xf32>
    %58 = math.exp %57 : vector<8x1xf32>
    %cst_30 = arith.constant dense<0.000000e+00> : vector<1xf32>
    %59 = vector.multi_reduction <add>, %58, %cst_30 [0] : vector<8x1xf32> to vector<1xf32>
    %60 = vector.shape_cast %59 : vector<1xf32> to vector<1x1xf32>
    %61 = tpu.reciprocal %60 : vector<1x1xf32> -> vector<1x1xf32>
    %62 = vector.broadcast %61 : vector<1x1xf32> to vector<8x1xf32>
    %63 = arith.mulf %58, %62 : vector<8x1xf32>
    %64 = vector.broadcast %63 : vector<8x1xf32> to vector<8x16xf32>
    %65 = arith.mulf %64, %41 : vector<8x16xf32>
    %cst_31 = arith.constant dense<0.000000e+00> : vector<16xf32>
    %66 = vector.multi_reduction <add>, %65, %cst_31 [0] : vector<8x16xf32> to vector<16xf32>
    %67 = vector.shape_cast %66 : vector<16xf32> to vector<1x16xf32>
    %68 = arith.mulf %67, %36 : vector<1x16xf32>
    %cst_32 = arith.constant dense<0.000000e+00> : vector<1xf32>
    %69 = vector.multi_reduction <add>, %68, %cst_32 [1] : vector<1x16xf32> to vector<1xf32>
    %70 = vector.shape_cast %69 : vector<1xf32> to vector<1x1xf32>
    %71 = arith.addf %70, %37 : vector<1x1xf32>
    %72 = tpu.transpose %63, [1, 0] : vector<8x1xf32> -> vector<1x8xf32>
    %73 = tpu.concatenate %71, %72, %38 in 1 : vector<1x1xf32>, vector<1x8xf32>, vector<1x119xf32> -> vector<1x128xf32>
    %74 = vector.extract_strided_slice %25 {offsets = [8, 0], sizes = [8, 16], strides = [1, 1]} : vector<16x16xf32> to vector<8x16xf32>
    %75 = vector.extract_strided_slice %33 {offsets = [8, 0], sizes = [8, 16], strides = [1, 1]} : vector<16x16xf32> to vector<8x16xf32>
    %76 = vector.extract_strided_slice %11 {offsets = [8, 0], sizes = [8, 16], strides = [1, 1]} : vector<16x16xf32> to vector<8x16xf32>
    %77 = vector.broadcast %34 : vector<8x1xf32> to vector<8x16xf32>
    %78 = arith.mulf %77, %75 : vector<8x16xf32>
    %cst_33 = arith.constant dense<0.000000e+00> : vector<16xf32>
    %79 = vector.multi_reduction <add>, %78, %cst_33 [0] : vector<8x16xf32> to vector<16xf32>
    %80 = vector.shape_cast %79 : vector<16xf32> to vector<1x16xf32>
    %81 = vector.broadcast %80 : vector<1x16xf32> to vector<8x16xf32>
    %82 = arith.mulf %74, %81 : vector<8x16xf32>
    %cst_34 = arith.constant dense<0.000000e+00> : vector<8xf32>
    %83 = vector.multi_reduction <add>, %82, %cst_34 [1] : vector<8x16xf32> to vector<8xf32>
    %84 = vector.shape_cast %83 : vector<8xf32> to vector<8x1xf32>
    %85 = vector.broadcast %35 : vector<1x1xf32> to vector<8x1xf32>
    %86 = arith.addf %84, %85 : vector<8x1xf32>
    %cst_35 = arith.constant 1.000000e+00 : f32
    %87 = vector.broadcast %cst_35 : f32 to vector<8x1xf32>
    %88 = arith.mulf %86, %87 : vector<8x1xf32>
    %cst_36 = arith.constant dense<0xFF800000> : vector<1xf32>
    %89 = vector.multi_reduction <maximumf>, %88, %cst_36 [0] : vector<8x1xf32> to vector<1xf32>
    %90 = vector.shape_cast %89 : vector<1xf32> to vector<1x1xf32>
    %91 = vector.broadcast %90 : vector<1x1xf32> to vector<8x1xf32>
    %92 = arith.subf %88, %91 : vector<8x1xf32>
    %93 = math.exp %92 : vector<8x1xf32>
    %cst_37 = arith.constant dense<0.000000e+00> : vector<1xf32>
    %94 = vector.multi_reduction <add>, %93, %cst_37 [0] : vector<8x1xf32> to vector<1xf32>
    %95 = vector.shape_cast %94 : vector<1xf32> to vector<1x1xf32>
    %96 = tpu.reciprocal %95 : vector<1x1xf32> -> vector<1x1xf32>
    %97 = vector.broadcast %96 : vector<1x1xf32> to vector<8x1xf32>
    %98 = arith.mulf %93, %97 : vector<8x1xf32>
    %99 = vector.broadcast %98 : vector<8x1xf32> to vector<8x16xf32>
    %100 = arith.mulf %99, %76 : vector<8x16xf32>
    %cst_38 = arith.constant dense<0.000000e+00> : vector<16xf32>
    %101 = vector.multi_reduction <add>, %100, %cst_38 [0] : vector<8x16xf32> to vector<16xf32>
    %102 = vector.shape_cast %101 : vector<16xf32> to vector<1x16xf32>
    %103 = arith.mulf %102, %36 : vector<1x16xf32>
    %cst_39 = arith.constant dense<0.000000e+00> : vector<1xf32>
    %104 = vector.multi_reduction <add>, %103, %cst_39 [1] : vector<1x16xf32> to vector<1xf32>
    %105 = vector.shape_cast %104 : vector<1xf32> to vector<1x1xf32>
    %106 = arith.addf %105, %37 : vector<1x1xf32>
    %107 = tpu.transpose %98, [1, 0] : vector<8x1xf32> -> vector<1x8xf32>
    %108 = tpu.concatenate %106, %107, %38 in 1 : vector<1x1xf32>, vector<1x8xf32>, vector<1x119xf32> -> vector<1x128xf32>
    %109 = tpu.concatenate %73, %108 in 0 : vector<1x128xf32>, vector<1x128xf32> -> vector<2x128xf32>
    %c0_40 = arith.constant 0 : index
    %c0_41 = arith.constant 0 : index
    %110 = vector.load %arg10[%c0_40, %c0_41] : memref<2x128xf32, #tpu.memory_space<vmem>>, vector<2x128xf32>
    tpu.vector_store %arg10[%c0_40, %c0_41], %109 {strides = array<i32>} : memref<2x128xf32, #tpu.memory_space<vmem>>, vector<2x128xf32>,
    return
  }
}

</mosaic_0001>

<llo_original>
// kernel: casii_head_forward.1
$region0: #{casii_head_forward.1}
  #allocation0 [shape = 'u32[]', space=smem, size = 0x4, offset = 0x4, fixed_abs, tag = 'smem constant byte address 0x4 - core index']
  #allocation1 [shape = 'u32[144,128]{1,0:T(1,128)}', space=vmem, size = 0x12000, scoped, tag = 'internal scratch']
  #allocation2 [shape = 'f32[1,1]{1,0:T(1,128)S(1)}', space=vmem, size = 0x200, scoped, tag = 'scoped memory for casii_head_forward.1']
  #allocation3 [shape = 'f32[1,1]{1,0:T(1,128)S(1)}', space=vmem, size = 0x200, scoped, tag = 'scoped memory for casii_head_forward.1']
  %s0 = inlined_call_operand.vmem [shape: f32[16,32], index: 0, kind: input, shape index: {}]
  %s1 = inlined_call_operand.vmem [shape: f32[16,32], index: 1, kind: input, shape index: {}]
  %s2 = inlined_call_operand.vmem [shape: f32[32,32], index: 2, kind: input, shape index: {}]
  %s3 = inlined_call_operand.vmem [shape: f32[1,32], index: 3, kind: input, shape index: {}]
  %s4 = inlined_call_operand.vmem [shape: f32[32,16], index: 4, kind: input, shape index: {}]
  %s5 = inlined_call_operand.vmem [shape: f32[1,16], index: 5, kind: input, shape index: {}]
  %s6 = inlined_call_operand.vmem [shape: f32[8,1], index: 6, kind: input, shape index: {}]
  %s7 = inlined_call_operand.<no memory space> [shape: f32[1,1], index: 7, kind: input, shape index: {}]
  %s8 = inlined_call_operand.vmem [shape: f32[1,16], index: 8, kind: input, shape index: {}]
  %s9 = inlined_call_operand.<no memory space> [shape: f32[1,1], index: 9, kind: input, shape index: {}]
  %s10 = inlined_call_operand.vmem [shape: f32[2,128], index: 10, kind: output, shape index: {}]
  %s11 = sld [smem:[#allocation0]]
  $region50: #{casii_head_forward.1} parent=0
    _
  %s13 = ssub.s32 1, %s11
  %s14 = scalar_select 0, %s13, %s11
  %v15 = vstv %s7
  %16 = vst [vmem:[#allocation2] sm:$0x1] %v15
  %v17 = vstv %s9
  %18 = vst [vmem:[#allocation3] sm:$0x1] %v17
  // Predicated region
  $region2: #{casii_head_forward.1} parent=0 // pred_check
    _
  $region3: #{casii_head_forward.1} parent=0 // pred_check_branch
    %20 = sbr.rel (0) target = $region5
  $region4: #{casii_head_forward.1} parent=0 // pred_region
    _
  $region5: #{casii_head_forward.1} parent=0 // pred_fallthru
    _
  // Predicated region
  $region6: #{casii_head_forward.1} parent=0 // pred_check
    _
  $region7: #{casii_head_forward.1} parent=0 // pred_check_branch
    %22 = sbr.rel (0) target = $region9
  $region8: #{casii_head_forward.1} parent=0 // pred_region
    _
  $region9: #{casii_head_forward.1} parent=0 // pred_fallthru
    _
  // Predicated region
  $region10: #{casii_head_forward.1} parent=0 // pred_check
    _
  $region11: #{casii_head_forward.1} parent=0 // pred_check_branch
    %24 = sbr.rel (0) target = $region13
  $region12: #{casii_head_forward.1} parent=0 // pred_region
    _
  $region13: #{casii_head_forward.1} parent=0 // pred_fallthru
    _
  // Predicated region
  $region14: #{casii_head_forward.1} parent=0 // pred_check
    _
  $region15: #{casii_head_forward.1} parent=0 // pred_check_branch
    %26 = sbr.rel (0) target = $region17
  $region16: #{casii_head_forward.1} parent=0 // pred_region
    _
  $region17: #{casii_head_forward.1} parent=0 // pred_fallthru
    _
  // Predicated region
  $region18: #{casii_head_forward.1} parent=0 // pred_check
    _
  $region19: #{casii_head_forward.1} parent=0 // pred_check_branch
    %28 = sbr.rel (0) target = $region21
  $region20: #{casii_head_forward.1} parent=0 // pred_region
    _
  $region21: #{casii_head_forward.1} parent=0 // pred_fallthru
    _
  // Predicated region
  $region22: #{casii_head_forward.1} parent=0 // pred_check
    _
  $region23: #{casii_head_forward.1} parent=0 // pred_check_branch
    %30 = sbr.rel (0) target = $region25
  $region24: #{casii_head_forward.1} parent=0 // pred_region
    _
  $region25: #{casii_head_forward.1} parent=0 // pred_fallthru
    _
  // Predicated region
  $region26: #{casii_head_forward.1} parent=0 // pred_check
    _
  $region27: #{casii_head_forward.1} parent=0 // pred_check_branch
    %32 = sbr.rel (0) target = $region29
  $region28: #{casii_head_forward.1} parent=0 // pred_region
    _
  $region29: #{casii_head_forward.1} parent=0 // pred_fallthru
    _
  // Predicated region
  $region30: #{casii_head_forward.1} parent=0 // pred_check
    _
  $region31: #{casii_head_forward.1} parent=0 // pred_check_branch
    %34 = sbr.rel (0) target = $region33
  $region32: #{casii_head_forward.1} parent=0 // pred_region
    _
  $region33: #{casii_head_forward.1} parent=0 // pred_fallthru
    _
  // Predicated region
  $region34: #{casii_head_forward.1} parent=0 // pred_check
    _
  $region35: #{casii_head_forward.1} parent=0 // pred_check_branch
    %36 = sbr.rel (0) target = $region37
  $region36: #{casii_head_forward.1} parent=0 // pred_region
    _
  $region37: #{casii_head_forward.1} parent=0 // pred_fallthru
    _
  // Predicated region
  $region38: #{casii_head_forward.1} parent=0 // pred_check
    _
  $region39: #{casii_head_forward.1} parent=0 // pred_check_branch
    %38 = sbr.rel (0) target = $region41
  $region40: #{casii_head_forward.1} parent=0 // pred_region
    _
  $region41: #{casii_head_forward.1} parent=0 // pred_fallthru
    _
  %v39 = vld [vmem:[%s0] sm:$0xff]
  %v40 = vld [vmem:[%s0 + $0x8] sm:$0xff]
  %v41 = vld [vmem:[%s1] sm:$0xff]
  %v42 = vld [vmem:[%s1 + $0x8] sm:$0xff]
  %v43 = vld [vmem:[%s2] sm:$0xff]
  %v44 = vld [vmem:[%s2 + $0x8] sm:$0xff]
  %v45 = vld [vmem:[%s2 + $0x10] sm:$0xff]
  %v46 = vld [vmem:[%s2 + $0x18] sm:$0xff]
  %v47 = vld [vmem:[%s3] sm:$0x1]
  %v49 = vlaneseq
  %v50 = vshrl.u32 %v49, 7
  %v51 = vsub.s32 0, %v50
  %v52 = vrot.slane %v47, %v51
  %vm54 = vcmask 261120
  %v56 = vsel %vm54, %v39, 0
  %v59 = vsel %vm54, %v40, 0
  %61 = vmatprep.subr.mxu0 0.0
  %62 = vmatpush1.msra.mxu0 %v43
  %63 = vmatprep.subr.mxu0 0.0
  %64 = vmatpush1.msra.mxu0 %v44
  %65 = vmatprep.subr.mxu0 0.0
  %66 = vmatpush1.msra.mxu0 %v45
  %67 = vmatprep.subr.mxu0 0.0
  %68 = vmatpush1.msra.mxu0 %v46
  %69 = vmatprep.subr.mxu0 0.0
  %70 = vmatpush1.msra.mxu0 0.0
  %71 = vmatprep.subr.mxu0 0.0
  %72 = vmatpush1.msra.mxu0 0.0
  %73 = vmatprep.subr.mxu0 0.0
  %74 = vmatpush1.msra.mxu0 0.0
  %75 = vmatprep.subr.mxu0 0.0
  %76 = vmatpush1.msra.mxu0 0.0
  %77 = vmatprep.subr.mxu0 0.0
  %78 = vmatpush1.msra.mxu0 0.0
  %79 = vmatprep.subr.mxu0 0.0
  %80 = vmatpush1.msra.mxu0 0.0
  %81 = vmatprep.subr.mxu0 0.0
  %82 = vmatpush1.msra.mxu0 0.0
  %83 = vmatprep.subr.mxu0 0.0
  %84 = vmatpush1.msra.mxu0 0.0
  %85 = vmatprep.subr.mxu0 0.0
  %86 = vmatpush1.msra.mxu0 0.0
  %87 = vmatprep.subr.mxu0 0.0
  %88 = vmatpush1.msra.mxu0 0.0
  %89 = vmatprep.subr.mxu0 0.0
  %90 = vmatpush1.msra.mxu0 0.0
  %91 = vmatprep.subr.mxu0 0.0
  %92 = vmatpush1.msra.mxu0 0.0
  %93 = vmatprep.subr.mxu0 0.0
  %94 = vmatpush1.msra.mxu0 0.0
  %95 = vmatprep.subr.mxu0 0.0
  %96 = vmatpush1.msra.mxu0 0.0
  %97 = vmatprep.subr.mxu0 0.0
  %98 = vmatpush1.msra.mxu0 0.0
  %99 = vmatprep.subr.mxu0 0.0
  %100 = vmatpush1.msra.mxu0 0.0
  %101 = vmatprep.subr.mxu0 0.0
  %102 = vmatpush1.msra.mxu0 0.0
  %103 = vmatprep.subr.mxu0 0.0
  %104 = vmatpush1.msra.mxu0 0.0
  %105 = vmatprep.subr.mxu0 0.0
  %106 = vmatpush1.msra.mxu0 0.0
  %107 = vmatprep.subr.mxu0 0.0
  %108 = vmatpush1.msra.mxu0 0.0
  %109 = vmatprep.subr.mxu0 0.0
  %110 = vmatpush1.msra.mxu0 0.0
  %111 = vmatprep.subr.mxu0 0.0
  %112 = vmatpush1.msra.mxu0 0.0
  %113 = vmatprep.subr.mxu0 0.0
  %114 = vmatpush1.msra.mxu0 0.0
  %115 = vmatprep.subr.mxu0 0.0
  %116 = vmatpush1.msra.mxu0 0.0
  %117 = vmatprep.subr.mxu0 0.0
  %118 = vmatpush1.msra.mxu0 0.0
  %119 = vmatprep.subr.mxu0 0.0
  %120 = vmatpush1.msra.mxu0 0.0
  %121 = vmatprep.subr.mxu0 0.0
  %122 = vmatpush1.msra.mxu0 0.0
  %123 = vmatprep.subr.mxu0 0.0
  %124 = vmatpush1.msra.mxu0 0.0
  %125 = vmatprep.mubr.f32.mxu0 0.0
  %126 = vmatmul.mubr.f32.gmra.mrb[0].mxu0 %v56
  %v127 = vpop.f32.mrb[0].mxu0
  %v128 = vadd.f32 %v52, %v127
  %v129 = vpop.f32.mrb[0].mxu0
  %130 = vmatprep.mubr.f32.mxu0 0.0
  %131 = vmatmul.mubr.f32.gmra.mrb[0].mxu0 %v59
  %v132 = vpop.f32.mrb[0].mxu0
  %v133 = vadd.f32 %v52, %v132
  %v134 = vpop.f32.mrb[0].mxu0
  %135 = vdwg.mxu0
  %v136 = vtanh.pop %v128
  %v137 = vtanh.pop %v133
  %v138 = vmax.f32 %v128, 0.0
  %v139 = vmax.f32 %v133, 0.0
  %v140 = vld [vmem:[%s4] sm:$0xff]
  %v141 = vld [vmem:[%s4 + $0x8] sm:$0xff]
  %v142 = vld [vmem:[%s4 + $0x10] sm:$0xff]
  %v143 = vld [vmem:[%s4 + $0x18] sm:$0xff]
  %v144 = vld [vmem:[%s5] sm:$0x1]
  %v146 = vlaneseq
  %v147 = vshrl.u32 %v146, 7
  %v148 = vsub.s32 0, %v147
  %v149 = vrot.slane %v144, %v148
  %v152 = vsel %vm54, %v41, 0
  %v155 = vsel %vm54, %v42, 0
  %157 = vmatprep.subr.mxu0 0.0
  %158 = vmatpush1.msra.mxu0 %v140
  %159 = vmatprep.subr.mxu0 0.0
  %160 = vmatpush1.msra.mxu0 %v141
  %161 = vmatprep.subr.mxu0 0.0
  %162 = vmatpush1.msra.mxu0 %v142
  %163 = vmatprep.subr.mxu0 0.0
  %164 = vmatpush1.msra.mxu0 %v143
  %165 = vmatprep.subr.mxu0 0.0
  %166 = vmatpush1.msra.mxu0 0.0
  %167 = vmatprep.subr.mxu0 0.0
  %168 = vmatpush1.msra.mxu0 0.0
  %169 = vmatprep.subr.mxu0 0.0
  %170 = vmatpush1.msra.mxu0 0.0
  %171 = vmatprep.subr.mxu0 0.0
  %172 = vmatpush1.msra.mxu0 0.0
  %173 = vmatprep.subr.mxu0 0.0
  %174 = vmatpush1.msra.mxu0 0.0
  %175 = vmatprep.subr.mxu0 0.0
  %176 = vmatpush1.msra.mxu0 0.0
  %177 = vmatprep.subr.mxu0 0.0
  %178 = vmatpush1.msra.mxu0 0.0
  %179 = vmatprep.subr.mxu0 0.0
  %180 = vmatpush1.msra.mxu0 0.0
  %181 = vmatprep.subr.mxu0 0.0
  %182 = vmatpush1.msra.mxu0 0.0
  %183 = vmatprep.subr.mxu0 0.0
  %184 = vmatpush1.msra.mxu0 0.0
  %185 = vmatprep.subr.mxu0 0.0
  %186 = vmatpush1.msra.mxu0 0.0
  %187 = vmatprep.subr.mxu0 0.0
  %188 = vmatpush1.msra.mxu0 0.0
  %189 = vmatprep.subr.mxu0 0.0
  %190 = vmatpush1.msra.mxu0 0.0
  %191 = vmatprep.subr.mxu0 0.0
  %192 = vmatpush1.msra.mxu0 0.0
  %193 = vmatprep.subr.mxu0 0.0
  %194 = vmatpush1.msra.mxu0 0.0
  %195 = vmatprep.subr.mxu0 0.0
  %196 = vmatpush1.msra.mxu0 0.0
  %197 = vmatprep.subr.mxu0 0.0
  %198 = vmatpush1.msra.mxu0 0.0
  %199 = vmatprep.subr.mxu0 0.0
  %200 = vmatpush1.msra.mxu0 0.0
  %201 = vmatprep.subr.mxu0 0.0
  %202 = vmatpush1.msra.mxu0 0.0
  %203 = vmatprep.subr.mxu0 0.0
  %204 = vmatpush1.msra.mxu0 0.0
  %205 = vmatprep.subr.mxu0 0.0
  %206 = vmatpush1.msra.mxu0 0.0
  %207 = vmatprep.subr.mxu0 0.0
  %208 = vmatpush1.msra.mxu0 0.0
  %209 = vmatprep.subr.mxu0 0.0
  %210 = vmatpush1.msra.mxu0 0.0
  %211 = vmatprep.subr.mxu0 0.0
  %212 = vmatpush1.msra.mxu0 0.0
  %213 = vmatprep.subr.mxu0 0.0
  %214 = vmatpush1.msra.mxu0 0.0
  %215 = vmatprep.subr.mxu0 0.0
  %216 = vmatpush1.msra.mxu0 0.0
  %217 = vmatprep.subr.mxu0 0.0
  %218 = vmatpush1.msra.mxu0 0.0
  %219 = vmatprep.subr.mxu0 0.0
  %220 = vmatpush1.msra.mxu0 0.0
  %221 = vmatprep.mubr.f32.mxu0 0.0
  %222 = vmatmul.mubr.f32.gmra.mrb[0].mxu0 %v152
  %v223 = vpop.f32.mrb[0].mxu0
  %v224 = vadd.f32 %v149, %v223
  %v225 = vpop.f32.mrb[0].mxu0
  %226 = vmatprep.mubr.f32.mxu0 0.0
  %227 = vmatmul.mubr.f32.gmra.mrb[0].mxu0 %v155
  %v228 = vpop.f32.mrb[0].mxu0
  %v229 = vadd.f32 %v149, %v228
  %v230 = vpop.f32.mrb[0].mxu0
  %231 = vdwg.mxu0
  %v232 = vtanh.pop %v224
  %v233 = vtanh.pop %v229
  %v234 = vmul.f32 %v136, %v136
  %v235 = vmul.f32 %v137, %v137
  %vm236 = vcmask 130048
  %v237 = vsel %vm236, %v234, 0.0
  %238 = vadd.xlane.f32.xlu0 %v237
  %v239 = vpop.xlane.xlu0 %238
  %v240 = vsel %vm236, %v235, 0.0
  %241 = vadd.xlane.f32.xlu0 %v240
  %v242 = vpop.xlane.xlu0 %241
  %v243 = vmax.f32 %v239, 1e-24
  %v244 = vmax.f32 %v242, 1e-24
  %v245 = vrsqrt.pop %v243
  %v246 = vrsqrt.pop %v244
  %v247 = vmul.f32 %v136, %v245
  %v248 = vmul.f32 %v137, %v246
  %v249 = vmul.f32 %v232, %v232
  %v250 = vmul.f32 %v233, %v233
  %v251 = vsel %vm236, %v249, 0.0
  %252 = vadd.xlane.f32.xlu0 %v251
  %v253 = vpop.xlane.xlu0 %252
  %v254 = vsel %vm236, %v250, 0.0
  %255 = vadd.xlane.f32.xlu0 %v254
  %v256 = vpop.xlane.xlu0 %255
  %v257 = vmax.f32 %v253, 1e-24
  %v258 = vmax.f32 %v256, 1e-24
  %v259 = vrsqrt.pop %v257
  %v260 = vrsqrt.pop %v258
  %v261 = vmul.f32 %v232, %v259
  %v262 = vmul.f32 %v233, %v260
  %v263 = vld [vmem:[%s6] sm:$0xff]
  %v264 = vld [vmem:[#allocation2] sm:$0x1]
  %v265 = vld [vmem:[%s8] sm:$0x1]
  %v266 = vld [vmem:[#allocation3] sm:$0x1]
  %268 = vset.pattern.permute.xlu0 0
  %269 = vperm.xlu0 %268, %v263
  %v270 = vpop.permute.xlu0 %269
  %v272 = vmul.f32 %v270, %v261
  %v273 = vsel %vm236, %v272, 0.0
  %v274 = vrot.slane %v273, 4
  %v275 = vadd.f32 %v273, %v274
  %v276 = vrot.slane %v275, 2
  %v277 = vadd.f32 %v275, %v276
  %v278 = vrot.slane %v277, 1
  %v279 = vadd.f32 %v277, %v278
  %v280 = vmul.f32 %v247, %v279
  %v281 = vsel %vm236, %v280, 0.0
  %282 = vadd.xlane.f32.xlu0 %v281
  %v283 = vpop.xlane.xlu0 %282
  %v285 = vlaneseq
  %v286 = vshrl.u32 %v285, 7
  %v287 = vsub.s32 0, %v286
  %v288 = vrot.slane %v264, %v287
  %v290 = vadd.f32 %v283, %v288
  %vm291 = vcmask 7168
  %v292 = vsel %vm291, %v290, -inf
  %v293 = vrot.slane %v292, 4
  %v294 = vmax.f32 %v292, %v293
  %v295 = vrot.slane %v294, 2
  %v296 = vmax.f32 %v294, %v295
  %v297 = vrot.slane %v296, 1
  %v298 = vmax.f32 %v296, %v297
  %v299 = vsub.f32 %v290, %v298
  %v300 = vmul.f32 %v299, 1.442695
  %v301 = vpow.pop %v300
  %v302 = vsel %vm291, %v301, 0.0
  %v303 = vrot.slane %v302, 4
  %v304 = vadd.f32 %v302, %v303
  %v305 = vrot.slane %v304, 2
  %v306 = vadd.f32 %v304, %v305
  %v307 = vrot.slane %v306, 1
  %v308 = vadd.f32 %v306, %v307
  %v309 = vrcp.pop %v308
  %v310 = vmul.f32 %v301, %v309
  %312 = vset.pattern.permute.xlu0 0
  %313 = vperm.xlu0 %312, %v310
  %v314 = vpop.permute.xlu0 %313
  %v316 = vmul.f32 %v314, %v138
  %vm317 = vcmask 261248
  %v318 = vsel %vm317, %v316, 0.0
  %v319 = vrot.slane %v318, 4
  %v320 = vadd.f32 %v318, %v319
  %v321 = vrot.slane %v320, 2
  %v322 = vadd.f32 %v320, %v321
  %v323 = vrot.slane %v322, 1
  %v324 = vadd.f32 %v322, %v323
  %v326 = vlaneseq
  %v327 = vshrl.u32 %v326, 7
  %v328 = vsub.s32 0, %v327
  %v329 = vrot.slane %v265, %v328
  %330 = vrot.lane.b32.xlu0 %v329, 16
  %v331 = vpop.permute.xlu0 %330
  %v333 = vmul.f32 %v324, %v331
  %335 = vrot.lane.b32.xlu0 %v333, 112
  %v336 = vpop.permute.xlu0 %335
  %vm338 = vcmask 122880
  %v339 = vsel %vm338, %v336, 0.0
  %340 = vadd.xlane.f32.xlu0 %v339
  %v341 = vpop.xlane.xlu0 %340
  %v342 = vadd.f32 %v341, %v266
  %343 = vxpose.xlu0.b32.start [1/16] %v310, 128
  %344 = vxpose.xlu0.b32.cont [2/16] 0.0, 128
  %345 = vxpose.xlu0.b32.cont [3/16] 0.0, 128
  %346 = vxpose.xlu0.b32.cont [4/16] 0.0, 128
  %347 = vxpose.xlu0.b32.cont [5/16] 0.0, 128
  %348 = vxpose.xlu0.b32.cont [6/16] 0.0, 128
  %349 = vxpose.xlu0.b32.cont [7/16] 0.0, 128
  %350 = vxpose.xlu0.b32.cont [8/16] 0.0, 128
  %351 = vxpose.xlu0.b32.cont [9/16] 0.0, 128
  %352 = vxpose.xlu0.b32.cont [10/16] 0.0, 128
  %353 = vxpose.xlu0.b32.cont [11/16] 0.0, 128
  %354 = vxpose.xlu0.b32.cont [12/16] 0.0, 128
  %355 = vxpose.xlu0.b32.cont [13/16] 0.0, 128
  %356 = vxpose.xlu0.b32.cont [14/16] 0.0, 128
  %357 = vxpose.xlu0.b32.cont [15/16] 0.0, 128
  %358 = vxpose.xlu0.b32.end [16/16] 0.0, 128
  %v359 = vpop.trf.xlu0
  %v360 = vpop.trf.xlu0
  %v361 = vpop.trf.xlu0
  %v362 = vpop.trf.xlu0
  %v363 = vpop.trf.xlu0
  %v364 = vpop.trf.xlu0
  %v365 = vpop.trf.xlu0
  %v366 = vpop.trf.xlu0
  %v367 = vpop.trf.xlu0
  %v368 = vpop.trf.xlu0
  %v369 = vpop.trf.xlu0
  %v370 = vpop.trf.xlu0
  %v371 = vpop.trf.xlu0
  %v372 = vpop.trf.xlu0
  %v373 = vpop.trf.xlu0
  %v374 = vpop.trf.xlu0
  %376 = vrot.lane.b32.xlu0 %v359, 1
  %v377 = vpop.permute.xlu0 %376
  %v379 = vsel %vm291, %v342, %v377
  %vm380 = vcmask 72704
  %v381 = vsel %vm380, %v379, 0.0
  %v382 = vmul.f32 %v270, %v262
  %v383 = vsel %vm236, %v382, 0.0
  %v384 = vrot.slane %v383, 4
  %v385 = vadd.f32 %v383, %v384
  %v386 = vrot.slane %v385, 2
  %v387 = vadd.f32 %v385, %v386
  %v388 = vrot.slane %v387, 1
  %v389 = vadd.f32 %v387, %v388
  %v390 = vmul.f32 %v248, %v389
  %v391 = vsel %vm236, %v390, 0.0
  %392 = vadd.xlane.f32.xlu0 %v391
  %v393 = vpop.xlane.xlu0 %392
  %v394 = vadd.f32 %v393, %v288
  %v395 = vsel %vm291, %v394, -inf
  %v396 = vrot.slane %v395, 4
  %v397 = vmax.f32 %v395, %v396
  %v398 = vrot.slane %v397, 2
  %v399 = vmax.f32 %v397, %v398
  %v400 = vrot.slane %v399, 1
  %v401 = vmax.f32 %v399, %v400
  %v402 = vsub.f32 %v394, %v401
  %v403 = vmul.f32 %v402, 1.442695
  %v404 = vpow.pop %v403
  %v405 = vsel %vm291, %v404, 0.0
  %v406 = vrot.slane %v405, 4
  %v407 = vadd.f32 %v405, %v406
  %v408 = vrot.slane %v407, 2
  %v409 = vadd.f32 %v407, %v408
  %v410 = vrot.slane %v409, 1
  %v411 = vadd.f32 %v409, %v410
  %v412 = vrcp.pop %v411
  %v413 = vmul.f32 %v404, %v412
  %415 = vset.pattern.permute.xlu0 0
  %416 = vperm.xlu0 %415, %v413
  %v417 = vpop.permute.xlu0 %416
  %v419 = vmul.f32 %v417, %v139
  %v420 = vsel %vm317, %v419, 0.0
  %v421 = vrot.slane %v420, 4
  %v422 = vadd.f32 %v420, %v421
  %v423 = vrot.slane %v422, 2
  %v424 = vadd.f32 %v422, %v423
  %v425 = vrot.slane %v424, 1
  %v426 = vadd.f32 %v424, %v425
  %v427 = vmul.f32 %v426, %v331
  %429 = vrot.lane.b32.xlu0 %v427, 112
  %v430 = vpop.permute.xlu0 %429
  %v432 = vsel %vm338, %v430, 0.0
  %433 = vadd.xlane.f32.xlu0 %v432
  %v434 = vpop.xlane.xlu0 %433
  %v435 = vadd.f32 %v434, %v266
  %436 = vxpose.xlu0.b32.start [1/16] %v413, 128
  %437 = vxpose.xlu0.b32.cont [2/16] 0.0, 128
  %438 = vxpose.xlu0.b32.cont [3/16] 0.0, 128
  %439 = vxpose.xlu0.b32.cont [4/16] 0.0, 128
  %440 = vxpose.xlu0.b32.cont [5/16] 0.0, 128
  %441 = vxpose.xlu0.b32.cont [6/16] 0.0, 128
  %442 = vxpose.xlu0.b32.cont [7/16] 0.0, 128
  %443 = vxpose.xlu0.b32.cont [8/16] 0.0, 128
  %444 = vxpose.xlu0.b32.cont [9/16] 0.0, 128
  %445 = vxpose.xlu0.b32.cont [10/16] 0.0, 128
  %446 = vxpose.xlu0.b32.cont [11/16] 0.0, 128
  %447 = vxpose.xlu0.b32.cont [12/16] 0.0, 128
  %448 = vxpose.xlu0.b32.cont [13/16] 0.0, 128
  %449 = vxpose.xlu0.b32.cont [14/16] 0.0, 128
  %450 = vxpose.xlu0.b32.cont [15/16] 0.0, 128
  %451 = vxpose.xlu0.b32.end [16/16] 0.0, 128
  %v452 = vpop.trf.xlu0
  %v453 = vpop.trf.xlu0
  %v454 = vpop.trf.xlu0
  %v455 = vpop.trf.xlu0
  %v456 = vpop.trf.xlu0
  %v457 = vpop.trf.xlu0
  %v458 = vpop.trf.xlu0
  %v459 = vpop.trf.xlu0
  %v460 = vpop.trf.xlu0
  %v461 = vpop.trf.xlu0
  %v462 = vpop.trf.xlu0
  %v463 = vpop.trf.xlu0
  %v464 = vpop.trf.xlu0
  %v465 = vpop.trf.xlu0
  %v466 = vpop.trf.xlu0
  %v467 = vpop.trf.xlu0
  %469 = vrot.lane.b32.xlu0 %v452, 1
  %v470 = vpop.permute.xlu0 %469
  %v472 = vsel %vm291, %v435, %v470
  %v473 = vsel %vm380, %v472, 0.0
  %v475 = vrot.slane %v473, 7
  %vm477 = vcmask 1040384
  %v478 = vsel %vm477, %v381, %v475
  %479 = vst [vmem:[%s10] sm:$0x3] %v478
  // Predicated region
  $region42: #{casii_head_forward.1} parent=0 // pred_check
    _
  $region43: #{casii_head_forward.1} parent=0 // pred_check_branch
    %481 = sbr.rel (0) target = $region45
  $region44: #{casii_head_forward.1} parent=0 // pred_region
    _
  $region45: #{casii_head_forward.1} parent=0 // pred_fallthru
    _
  // Predicated region
  $region46: #{casii_head_forward.1} parent=0 // pred_check
    _
  $region47: #{casii_head_forward.1} parent=0 // pred_check_branch
    %483 = sbr.rel (0) target = $region49
  $region48: #{casii_head_forward.1} parent=0 // pred_region
    _
  $region49: #{casii_head_forward.1} parent=0 // pred_fallthru
    _

</llo_original>
